<compile_context>
chip_gen: v6e
topology: v6e:2x2x1
jax: 0.10.0
libtpu: 0.0.40
codegen_flags: <defaults>
</compile_context>

<pallas_src>
import jax
import jax.numpy as jnp
from jax.experimental import pallas as pl
from jax.experimental.pallas import tpu as pltpu


def _round_up(x, m):
    return (x + m - 1) // m * m


def patch_embed_kernel(x_ref, w_ref, b_ref, o_ref):
    # x_ref: (TM, K)   streamed patch tile (compute dtype)
    # w_ref: (K, Ep)   projection weight, VMEM-resident across the grid
    # b_ref: (1, Ep)   bias (f32), VMEM-resident across the grid
    # o_ref: (TM, Ep)  output tile (lane-dense, Ep % 128 == 0)
    acc = jnp.dot(x_ref[...], w_ref[...], preferred_element_type=jnp.float32)
    o_ref[...] = (acc + b_ref[...]).astype(o_ref.dtype)


def _choose_tm(M, K, Ep, cdt_bytes, out_bytes, tile_m):
    """Pick the M tile size.

    - large (default 1024) to amortize the ~0.35us per-grid-step overhead,
    - but keep >= 2 grid steps when M allows so v7x can shard the M axis
      across its 2 TensorCores via dimension_semantics=("parallel",),
    - and keep the working set under ~14 MiB so the default scoped VMEM
      (16 MiB v5e, 32 MiB v6e/v7x) is never exceeded (no vmem override).
    """
    tm = max(16, int(tile_m))
    tm = min(tm, max(256, _round_up(pl.cdiv(M, 2), 256)))  # >= 2 steps for v7x megacore
    tm = min(tm, _round_up(M, 16))                         # never larger than needed

    def working_set(t):
        return (2 * t * K * cdt_bytes      # double-buffered activation tile
                + 2 * t * Ep * out_bytes   # double-buffered output tile
                + 2 * K * Ep * cdt_bytes   # resident weight (worst case 2 bufs)
                + 2 * Ep * 4)              # resident bias

    budget = 14 * 1024 * 1024
    while tm > 256 and working_set(tm) > budget:
        tm -= 256
    return max(16, _round_up(tm, 16))


def _build_gemm_call(M, K, Ep, TM, out_dtype, cost_estimate, single_buffer_weights):
    wb_kwargs = {}
    if single_buffer_weights and hasattr(pl, "Buffered"):
        # weight/bias have constant index_maps (DMA'd once); single-buffering
        # them frees their second VMEM buffer for M-tile headroom.
        wb_kwargs = dict(pipeline_mode=pl.Buffered(1))

    grid_spec = pltpu.PrefetchScalarGridSpec(
        num_scalar_prefetch=0,
        grid=(pl.cdiv(M, TM),),
        in_specs=[
            pl.BlockSpec((TM, K), lambda i: (i, 0)),                 # streamed over M
            pl.BlockSpec((K, Ep), lambda i: (0, 0), **wb_kwargs),    # resident weight
            pl.BlockSpec((1, Ep), lambda i: (0, 0), **wb_kwargs),    # resident bias
        ],
        out_specs=pl.BlockSpec((TM, Ep), lambda i: (i, 0)),
    )
    return pl.pallas_call(
        patch_embed_kernel,
        out_shape=jax.ShapeDtypeStruct((M, Ep), out_dtype),
        grid_spec=grid_spec,
        compiler_params=pltpu.CompilerParams(
            dimension_semantics=("parallel",),   # shard M across TCs on v7x
        ),
        cost_estimate=cost_estimate,
    )


def patch_embed_pallas(x, weight, bias, patch_size, *,
                       compute_dtype=jnp.bfloat16, out_dtype=None, tile_m=1024):
    """Equivalent of PatchEmbed.forward.

    x:      (B, C, H, W)    NCHW, like PyTorch
    weight: (E, C, ph, pw)  nn.Conv2d weight layout
    bias:   (E,)            nn.Conv2d bias
    returns (B, num_patches, E)  == proj(x).flatten(2).transpose(1, 2)
    """
    B, C, H, W = x.shape
    ph, pw = patch_size
    E = weight.shape[0]
    assert weight.shape == (E, C, ph, pw), weight.shape
    assert H % ph == 0 and W % pw == 0, "image size must be divisible by patch"
    Hp, Wp = H // ph, W // pw
    num_patches = Hp * Wp
    if out_dtype is None:
        out_dtype = x.dtype
    cdt = compute_dtype

    # --- glue: cast FIRST (so the patchify transpose moves half the bytes and
    # XLA fuses cast+transpose into one pass), then patch extraction matching
    # the conv reduction order (c, kh, kw).
    # (B,C,Hp,ph,Wp,pw) -> (B,Hp,Wp,C,ph,pw) -> (B*Hp*Wp, C*ph*pw)
    xc = x.astype(cdt)
    patches = xc.reshape(B, C, Hp, ph, Wp, pw)
    patches = jnp.transpose(patches, (0, 2, 4, 1, 3, 5))
    patches = patches.reshape(B * num_patches, C * ph * pw)

    M, K = patches.shape
    # Only the embedding (lane) dim is padded to 128 for lane-dense stores.
    # K and M are NOT padded (no extra HBM pass over the activation): the
    # activation block covers the full K extent, and the last partial M block's
    # garbage rows are never stored and never read downstream.
    Ep = _round_up(E, 128)

    w_mat = weight.reshape(E, K).T.astype(cdt)            # (K, E)
    b_mat = bias.astype(jnp.float32).reshape(1, E)
    if Ep != E:
        w_mat = jnp.pad(w_mat, ((0, 0), (0, Ep - E)))
        b_mat = jnp.pad(b_mat, ((0, 0), (0, Ep - E)))

    cdt_bytes = jnp.dtype(cdt).itemsize
    out_bytes = jnp.dtype(out_dtype).itemsize
    TM = _choose_tm(M, K, Ep, cdt_bytes, out_bytes, tile_m)

    cost = pl.CostEstimate(
        flops=2 * M * K * Ep,
        transcendentals=0,
        bytes_accessed=(M * K * cdt_bytes + K * Ep * cdt_bytes
                        + Ep * 4 + M * Ep * out_bytes),
    )

    try:
        out = _build_gemm_call(M, K, Ep, TM, out_dtype, cost, True)(
            patches, w_mat, b_mat)
    except Exception:
        # Some jax versions reject pl.Buffered(1); fall back to default
        # double-buffering (small VMEM overhead for the resident weight/bias).
        out = _build_gemm_call(M, K, Ep, TM, out_dtype, cost, False)(
            patches, w_mat, b_mat)

    if Ep != E:
        out = out[:, :E]
    return out.reshape(B, num_patches, E)


if __name__ == "__main__":
    # Small shapes consistent with the module:
    # img_size=16, patch_size=8, in_chans=4, embed_dim=32, batch=2
    B, C, H, W = 2, 4, 16, 16
    ph, pw = 8, 8
    E = 32

    key = jax.random.PRNGKey(0)
    kx, kw_, kb = jax.random.split(key, 3)

    x = jax.random.normal(kx, (B, C, H, W), dtype=jnp.float32)
    weight = jax.random.normal(kw_, (E, C, ph, pw), dtype=jnp.float32) * 0.02
    bias = jax.random.normal(kb, (E,), dtype=jnp.float32) * 0.02

    def conv_ref(xa, wa, ba):
        r = jax.lax.conv_general_dilated(
            xa, wa, window_strides=(ph, pw), padding="VALID",
            dimension_numbers=("NCHW", "OIHW", "NCHW"),
        ) + ba.reshape(1, E, 1, 1)
        return r.reshape(xa.shape[0], E, -1).transpose(0, 2, 1)

    ref = conv_ref(x, weight, bias)
    want_shape = (B, (H // ph) * (W // pw), E)

    # 1) f32 compute path (tight tolerance vs the XLA conv reference).
    out_f32 = jax.block_until_ready(
        patch_embed_pallas(x, weight, bias, (ph, pw), compute_dtype=jnp.float32))
    assert out_f32.shape == want_shape and out_f32.dtype == jnp.float32
    assert jnp.allclose(out_f32, ref, atol=1e-4, rtol=1e-4)

    # 2) default bf16 compute, bf16 output (what a bf16 pipeline would use).
    out_bf16 = jax.block_until_ready(
        patch_embed_pallas(x, weight, bias, (ph, pw), out_dtype=jnp.bfloat16))
    assert out_bf16.shape == want_shape and out_bf16.dtype == jnp.bfloat16
    assert jnp.allclose(out_bf16.astype(jnp.float32), ref, atol=2e-2, rtol=2e-2)

    # 3) multi-step grid with a partial final M block (exercises the no-M-pad
    #    path): img=32 -> 16 patches/image, B=3 -> M=48, tile_m=32 -> grid=2.
    B2, H2, W2 = 3, 32, 32
    x2 = jax.random.normal(jax.random.PRNGKey(1), (B2, C, H2, W2),
                           dtype=jnp.float32)
    ref2 = conv_ref(x2, weight, bias)
    out2 = jax.block_until_ready(
        patch_embed_pallas(x2, weight, bias, (ph, pw),
                           compute_dtype=jnp.float32, tile_m=32))
    assert out2.shape == (B2, (H2 // ph) * (W2 // pw), E)
    assert jnp.allclose(out2, ref2, atol=1e-4, rtol=1e-4)

    print("KERNEL_OK")
</pallas_src>

<mosaic_0001>
module attributes {stable_mosaic.version = 11 : i64} {
  func.func @patch_embed_kernel(%arg0: i32, %arg1: memref<16x256xf32, #tpu.memory_space<vmem>>, %arg2: memref<256x128xf32, #tpu.memory_space<vmem>>, %arg3: memref<1x128xf32, #tpu.memory_space<vmem>>, %arg4: memref<16x128xf32, #tpu.memory_space<vmem>>) attributes {dimension_semantics = [#tpu.dimension_semantics<parallel>], iteration_bounds = array<i64: 1>, scalar_prefetch = 0 : i64, scratch_operands = 0 : i64, tpu.core_type = #tpu.core_type<tc>, window_params = [{transform_indices = @transform_0, window_bounds = array<i64: 16, 256>}, {pipeline_mode = #tpu.pipeline_mode<synchronous>, transform_indices = @transform_1, window_bounds = array<i64: 256, 128>}, {pipeline_mode = #tpu.pipeline_mode<synchronous>, transform_indices = @transform_2, window_bounds = array<i64: 1, 128>}, {transform_indices = @transform_3, window_bounds = array<i64: 16, 128>}]} {
    %c0 = arith.constant 0 : index
    %c0_0 = arith.constant 0 : index
    %0 = vector.load %arg1[%c0, %c0_0] : memref<16x256xf32, #tpu.memory_space<vmem>>, vector<16x256xf32>
    %c0_1 = arith.constant 0 : index
    %c0_2 = arith.constant 0 : index
    %1 = vector.load %arg2[%c0_1, %c0_2] : memref<256x128xf32, #tpu.memory_space<vmem>>, vector<256x128xf32>
    %cst = arith.constant dense<0.000000e+00> : vector<16x128xf32>
    %2 = tpu.matmul %0, %1, %cst {dimension_numbers = #tpu.dot_dimension_numbers<[1], [0], [0], [1], [0, 0, 1, 1], [], []>} : vector<16x256xf32>, vector<256x128xf32>, vector<16x128xf32> -> vector<16x128xf32>
    %c0_3 = arith.constant 0 : index
    %c0_4 = arith.constant 0 : index
    %3 = vector.load %arg3[%c0_3, %c0_4] : memref<1x128xf32, #tpu.memory_space<vmem>>, vector<1x128xf32>
    %4 = vector.broadcast %3 : vector<1x128xf32> to vector<16x128xf32>
    %5 = arith.addf %2, %4 : vector<16x128xf32>
    %c0_5 = arith.constant 0 : index
    %c0_6 = arith.constant 0 : index
    %6 = vector.load %arg4[%c0_5, %c0_6] : memref<16x128xf32, #tpu.memory_space<vmem>>, vector<16x128xf32>
    tpu.vector_store %arg4[%c0_5, %c0_6], %5 {strides = array<i32>} : memref<16x128xf32, #tpu.memory_space<vmem>>, vector<16x128xf32>,
    return
  }
  func.func @transform_0(%arg0: i32) -> (i32, i32) {
    %c0_i32 = arith.constant 0 : i32
    %c0_i32_0 = arith.constant 0 : i32
    return %arg0, %c0_i32 : i32, i32
  }
  func.func @transform_1(%arg0: i32) -> (i32, i32) {
    %c0_i32 = arith.constant 0 : i32
    %c0_i32_0 = arith.constant 0 : i32
    %c0_i32_1 = arith.constant 0 : i32
    return %c0_i32, %c0_i32_0 : i32, i32
  }
  func.func @transform_2(%arg0: i32) -> (i32, i32) {
    %c0_i32 = arith.constant 0 : i32
    %c0_i32_0 = arith.constant 0 : i32
    %c0_i32_1 = arith.constant 0 : i32
    return %c0_i32, %c0_i32_0 : i32, i32
  }
  func.func @transform_3(%arg0: i32) -> (i32, i32) {
    %c0_i32 = arith.constant 0 : i32
    %c0_i32_0 = arith.constant 0 : i32
    return %arg0, %c0_i32 : i32, i32
  }
}

module attributes {stable_mosaic.version = 11 : i64} {
  func.func @patch_embed_kernel(%arg0: i32, %arg1: memref<16x256xf32, #tpu.memory_space<vmem>>, %arg2: memref<256x128xf32, #tpu.memory_space<vmem>>, %arg3: memref<1x128xf32, #tpu.memory_space<vmem>>, %arg4: memref<16x128xf32, #tpu.memory_space<vmem>>) attributes {dimension_semantics = [#tpu.dimension_semantics<parallel>], iteration_bounds = array<i64: 1>, scalar_prefetch = 0 : i64, scratch_operands = 0 : i64, tpu.core_type = #tpu.core_type<tc>, window_params = [{transform_indices = @transform_0, window_bounds = array<i64: 16, 256>}, {pipeline_mode = #tpu.pipeline_mode<synchronous>, transform_indices = @transform_1, window_bounds = array<i64: 256, 128>}, {pipeline_mode = #tpu.pipeline_mode<synchronous>, transform_indices = @transform_2, window_bounds = array<i64: 1, 128>}, {transform_indices = @transform_3, window_bounds = array<i64: 16, 128>}]} {
    %c0 = arith.constant 0 : index
    %c0_0 = arith.constant 0 : index
    %0 = vector.load %arg1[%c0, %c0_0] : memref<16x256xf32, #tpu.memory_space<vmem>>, vector<16x256xf32>
    %c0_1 = arith.constant 0 : index
    %c0_2 = arith.constant 0 : index
    %1 = vector.load %arg2[%c0_1, %c0_2] : memref<256x128xf32, #tpu.memory_space<vmem>>, vector<256x128xf32>
    %cst = arith.constant dense<0.000000e+00> : vector<16x128xf32>
    %2 = tpu.matmul %0, %1, %cst {dimension_numbers = #tpu.dot_dimension_numbers<[1], [0], [0], [1], [0, 0, 1, 1], [], []>} : vector<16x256xf32>, vector<256x128xf32>, vector<16x128xf32> -> vector<16x128xf32>
    %c0_3 = arith.constant 0 : index
    %c0_4 = arith.constant 0 : index
    %3 = vector.load %arg3[%c0_3, %c0_4] : memref<1x128xf32, #tpu.memory_space<vmem>>, vector<1x128xf32>
    %4 = vector.broadcast %3 : vector<1x128xf32> to vector<16x128xf32>
    %5 = arith.addf %2, %4 : vector<16x128xf32>
    %c0_5 = arith.constant 0 : index
    %c0_6 = arith.constant 0 : index
    %6 = vector.load %arg4[%c0_5, %c0_6] : memref<16x128xf32, #tpu.memory_space<vmem>>, vector<16x128xf32>
    tpu.vector_store %arg4[%c0_5, %c0_6], %5 {strides = array<i32>} : memref<16x128xf32, #tpu.memory_space<vmem>>, vector<16x128xf32>,
    return
  }
  func.func @transform_0(%arg0: i32) -> (i32, i32) {
    %c0_i32 = arith.constant 0 : i32
    %c0_i32_0 = arith.constant 0 : i32
    return %arg0, %c0_i32 : i32, i32
  }
  func.func @transform_1(%arg0: i32) -> (i32, i32) {
    %c0_i32 = arith.constant 0 : i32
    %c0_i32_0 = arith.constant 0 : i32
    %c0_i32_1 = arith.constant 0 : i32
    return %c0_i32, %c0_i32_0 : i32, i32
  }
  func.func @transform_2(%arg0: i32) -> (i32, i32) {
    %c0_i32 = arith.constant 0 : i32
    %c0_i32_0 = arith.constant 0 : i32
    %c0_i32_1 = arith.constant 0 : i32
    return %c0_i32, %c0_i32_0 : i32, i32
  }
  func.func @transform_3(%arg0: i32) -> (i32, i32) {
    %c0_i32 = arith.constant 0 : i32
    %c0_i32_0 = arith.constant 0 : i32
    return %arg0, %c0_i32 : i32, i32
  }
}

</mosaic_0001>

<llo_original>
// kernel: tpu_custom_call.1
$region0: #{tpu_custom_call.1}
  #allocation0 [shape = 'u32[]', space=smem, size = 0x4, offset = 0x4, fixed_abs, tag = 'smem constant byte address 0x4 - core index']
  #allocation1 [shape = 'u32[144,128]{1,0:T(1,128)}', space=vmem, size = 0x12000, scoped, tag = 'internal scratch']
  %s0 = inlined_call_operand.hbm [shape: f32[8,256], index: 0, kind: input, shape index: {}]
  %s1 = inlined_call_operand.hbm [shape: f32[256,128], index: 1, kind: input, shape index: {}]
  %s2 = inlined_call_operand.vmem [shape: f32[1,128], index: 2, kind: input, shape index: {}]
  %s3 = inlined_call_operand.hbm [shape: f32[8,128], index: 3, kind: output, shape index: {}]
  %s4 = sld [smem:[#allocation0]]
  $region30: #{tpu_custom_call.1} parent=0
    _
  %s6 = ssub.s32 1, %s4
  %s7 = scalar_select 0, %s6, %s4
  $region1: #{tpu_custom_call.1} parent=0
    #allocation2 [shape = 'u8[16384]{0}', space=vmem, size = 0x4000, scoped, tag = 'input window, operand 0, single buffered']
    #allocation3 [shape = 's32[1]{0}', space=sflag, size = 0x4, scoped, tag = 'scoped memory for tpu_custom_call.1']
    #allocation4 [shape = 's32[1]{0}', space=sflag, size = 0x4, scoped, tag = 'scoped memory for tpu_custom_call.1']
    #allocation5 [shape = 'u8[131072]{0}', space=vmem, size = 0x20000, scoped, tag = 'input window, operand 1, single buffered']
    #allocation6 [shape = 's32[1]{0}', space=sflag, size = 0x4, scoped, tag = 'scoped memory for tpu_custom_call.1']
    #allocation7 [shape = 'u8[8192]{0}', space=vmem, size = 0x2000, scoped, tag = 'output window, operand 0, single buffered']
    %8 = vsyncpa [#allocation3], 0
    %9 = vsyncpa [#allocation6], 0
    %10 = vsyncpa [#allocation4], 0
    // Predicated region
    $region2: #{tpu_custom_call.1} parent=1 // pred_check
      _
    $region3: #{tpu_custom_call.1} parent=1 // pred_check_branch
      %12 = sbr.rel (0) target = $region5
    $region4: #{tpu_custom_call.1} parent=1 // pred_region
      %s14 = ssub.s32 512, 256
      %15 = vsyncadd [#allocation3], %s14
      %s16 = sshll.u32 [#allocation2], 4
      %s17 = int_to_ptr.vmem [resolvable:$true] %s16
      %22 = dma.hbm_to_vmem [thread:$0]  %s0, 256, %s17, [#allocation3], 256, 256, 16
    $region5: #{tpu_custom_call.1} parent=1 // pred_fallthru
      _
    // Predicated region
    $region6: #{tpu_custom_call.1} parent=1 // pred_check
      _
    $region7: #{tpu_custom_call.1} parent=1 // pred_check_branch
      %24 = sbr.rel (0) target = $region9
    $region8: #{tpu_custom_call.1} parent=1 // pred_region
      %s26 = ssub.s32 4096, 4096
      %27 = vsyncadd [#allocation6], %s26
      %s28 = sshll.u32 [#allocation5], 4
      %s29 = int_to_ptr.vmem [resolvable:$true] %s28
      %34 = dma.hbm_to_vmem [thread:$0]  %s1, 4096, %s29, [#allocation6], 128, 128, 8
    $region9: #{tpu_custom_call.1} parent=1 // pred_fallthru
      _
    // Predicated region
    $region10: #{tpu_custom_call.1} parent=1 // pred_check
      _
    $region11: #{tpu_custom_call.1} parent=1 // pred_check_branch
      %36 = sbr.rel (0) target = $region13
    $region12: #{tpu_custom_call.1} parent=1 // pred_region
      _
    $region13: #{tpu_custom_call.1} parent=1 // pred_fallthru
      _
    // Predicated region
    $region14: #{tpu_custom_call.1} parent=1 // pred_check
      _
    $region15: #{tpu_custom_call.1} parent=1 // pred_check_branch
      %38 = sbr.rel (0) target = $region17
    $region16: #{tpu_custom_call.1} parent=1 // pred_region
      %39 = dma.done [#allocation3], 512
    $region17: #{tpu_custom_call.1} parent=1 // pred_fallthru
      _
    // Predicated region
    $region18: #{tpu_custom_call.1} parent=1 // pred_check
      _
    $region19: #{tpu_custom_call.1} parent=1 // pred_check_branch
      %41 = sbr.rel (0) target = $region21
    $region20: #{tpu_custom_call.1} parent=1 // pred_region
      %42 = dma.done [#allocation6], 4096
    $region21: #{tpu_custom_call.1} parent=1 // pred_fallthru
      _
    %v43 = vld [vmem:[#allocation2] sm:$0xff]
    %v44 = vld [vmem:[#allocation2 + $0x8] sm:$0xff]
    %v45 = vld [vmem:[#allocation2 + $0x10] sm:$0xff]
    %v46 = vld [vmem:[#allocation2 + $0x18] sm:$0xff]
    %v47 = vld [vmem:[#allocation5] sm:$0xff]
    %v48 = vld [vmem:[#allocation5 + $0x8] sm:$0xff]
    %v49 = vld [vmem:[#allocation5 + $0x10] sm:$0xff]
    %v50 = vld [vmem:[#allocation5 + $0x18] sm:$0xff]
    %v51 = vld [vmem:[#allocation5 + $0x20] sm:$0xff]
    %v52 = vld [vmem:[#allocation5 + $0x28] sm:$0xff]
    %v53 = vld [vmem:[#allocation5 + $0x30] sm:$0xff]
    %v54 = vld [vmem:[#allocation5 + $0x38] sm:$0xff]
    %v55 = vld [vmem:[#allocation5 + $0x40] sm:$0xff]
    %v56 = vld [vmem:[#allocation5 + $0x48] sm:$0xff]
    %v57 = vld [vmem:[#allocation5 + $0x50] sm:$0xff]
    %v58 = vld [vmem:[#allocation5 + $0x58] sm:$0xff]
    %v59 = vld [vmem:[#allocation5 + $0x60] sm:$0xff]
    %v60 = vld [vmem:[#allocation5 + $0x68] sm:$0xff]
    %v61 = vld [vmem:[#allocation5 + $0x70] sm:$0xff]
    %v62 = vld [vmem:[#allocation5 + $0x78] sm:$0xff]
    %v63 = vld [vmem:[#allocation5 + $0x80] sm:$0xff]
    %v64 = vld [vmem:[#allocation5 + $0x88] sm:$0xff]
    %v65 = vld [vmem:[#allocation5 + $0x90] sm:$0xff]
    %v66 = vld [vmem:[#allocation5 + $0x98] sm:$0xff]
    %v67 = vld [vmem:[#allocation5 + $0xa0] sm:$0xff]
    %v68 = vld [vmem:[#allocation5 + $0xa8] sm:$0xff]
    %v69 = vld [vmem:[#allocation5 + $0xb0] sm:$0xff]
    %v70 = vld [vmem:[#allocation5 + $0xb8] sm:$0xff]
    %v71 = vld [vmem:[#allocation5 + $0xc0] sm:$0xff]
    %v72 = vld [vmem:[#allocation5 + $0xc8] sm:$0xff]
    %v73 = vld [vmem:[#allocation5 + $0xd0] sm:$0xff]
    %v74 = vld [vmem:[#allocation5 + $0xd8] sm:$0xff]
    %v75 = vld [vmem:[#allocation5 + $0xe0] sm:$0xff]
    %v76 = vld [vmem:[#allocation5 + $0xe8] sm:$0xff]
    %v77 = vld [vmem:[#allocation5 + $0xf0] sm:$0xff]
    %v78 = vld [vmem:[#allocation5 + $0xf8] sm:$0xff]
    %v79 = vld [vmem:[%s2] sm:$0x1]
    %v81 = vlaneseq
    %v82 = vshrl.u32 %v81, 7
    %v83 = vsub.s32 0, %v82
    %v84 = vrot.slane %v79, %v83
    %86 = vmatprep.subr.mxu0 0.0
    %87 = vmatpush1.msra.mxu0 %v62
    %88 = vmatprep.subr.mxu0 0.0
    %89 = vmatpush1.msra.mxu0 %v61
    %90 = vmatprep.subr.mxu0 0.0
    %91 = vmatpush1.msra.mxu0 %v60
    %92 = vmatprep.subr.mxu0 0.0
    %93 = vmatpush1.msra.mxu0 %v59
    %94 = vmatprep.subr.mxu0 0.0
    %95 = vmatpush1.msra.mxu0 %v58
    %96 = vmatprep.subr.mxu0 0.0
    %97 = vmatpush1.msra.mxu0 %v57
    %98 = vmatprep.subr.mxu0 0.0
    %99 = vmatpush1.msra.mxu0 %v56
    %100 = vmatprep.subr.mxu0 0.0
    %101 = vmatpush1.msra.mxu0 %v55
    %102 = vmatprep.subr.mxu0 0.0
    %103 = vmatpush1.msra.mxu0 %v54
    %104 = vmatprep.subr.mxu0 0.0
    %105 = vmatpush1.msra.mxu0 %v53
    %106 = vmatprep.subr.mxu0 0.0
    %107 = vmatpush1.msra.mxu0 %v52
    %108 = vmatprep.subr.mxu0 0.0
    %109 = vmatpush1.msra.mxu0 %v51
    %110 = vmatprep.subr.mxu0 0.0
    %111 = vmatpush1.msra.mxu0 %v50
    %112 = vmatprep.subr.mxu0 0.0
    %113 = vmatpush1.msra.mxu0 %v49
    %114 = vmatprep.subr.mxu0 0.0
    %115 = vmatpush1.msra.mxu0 %v48
    %116 = vmatprep.subr.mxu0 0.0
    %117 = vmatpush1.msra.mxu0 %v47
    %118 = vmatprep.subr.mxu0 0.0
    %119 = vmatpush2.msra.mxu0 %v78
    %120 = vmatprep.subr.mxu0 0.0
    %121 = vmatpush2.msra.mxu0 %v77
    %122 = vmatprep.subr.mxu0 0.0
    %123 = vmatpush2.msra.mxu0 %v76
    %124 = vmatprep.subr.mxu0 0.0
    %125 = vmatpush2.msra.mxu0 %v75
    %126 = vmatprep.subr.mxu0 0.0
    %127 = vmatpush2.msra.mxu0 %v74
    %128 = vmatprep.subr.mxu0 0.0
    %129 = vmatpush2.msra.mxu0 %v73
    %130 = vmatprep.subr.mxu0 0.0
    %131 = vmatpush2.msra.mxu0 %v72
    %132 = vmatprep.subr.mxu0 0.0
    %133 = vmatpush2.msra.mxu0 %v71
    %134 = vmatprep.subr.mxu0 0.0
    %135 = vmatpush2.msra.mxu0 %v70
    %136 = vmatprep.subr.mxu0 0.0
    %137 = vmatpush2.msra.mxu0 %v69
    %138 = vmatprep.subr.mxu0 0.0
    %139 = vmatpush2.msra.mxu0 %v68
    %140 = vmatprep.subr.mxu0 0.0
    %141 = vmatpush2.msra.mxu0 %v67
    %142 = vmatprep.subr.mxu0 0.0
    %143 = vmatpush2.msra.mxu0 %v66
    %144 = vmatprep.subr.mxu0 0.0
    %145 = vmatpush2.msra.mxu0 %v65
    %146 = vmatprep.subr.mxu0 0.0
    %147 = vmatpush2.msra.mxu0 %v64
    %148 = vmatprep.subr.mxu0 0.0
    %149 = vmatpush2.msra.mxu0 %v63
    %150 = vmatprep.mubr.f32.mxu0 %v44
    %151 = vmatmul.mubr.f32.gmra.mxu0 %v43
    %v152 = vpop.f32.mrf.mxu0
    %v153 = vadd.f32 %v84, %v152
    %v154 = vpop.f32.mrf.mxu0
    %155 = vmatprep.mubr.f32.mxu0 %v46
    %156 = vmatmul.mubr.f32.gmra.mxu0 %v45
    %v157 = vpop.f32.mrf.mxu0
    %v158 = vadd.f32 %v84, %v157
    %v159 = vpop.f32.mrf.mxu0
    %160 = vdwg.mxu0
    %161 = vst [vmem:[#allocation7] sm:$0xff] %v153
    %162 = vst [vmem:[#allocation7 + $0x8] sm:$0xff] %v158
    // Predicated region
    $region22: #{tpu_custom_call.1} parent=1 // pred_check
      _
    $region23: #{tpu_custom_call.1} parent=1 // pred_check_branch
      %164 = sbr.rel (0) target = $region25
    $region24: #{tpu_custom_call.1} parent=1 // pred_region
      %s166 = ssub.s32 256, 128
      %167 = vsyncadd [#allocation4], %s166
      %s168 = sshll.u32 [#allocation7], 4
      %s169 = int_to_ptr.vmem [resolvable:$true] %s168
      %174 = dma.vmem_to_hbm [thread:$0]  %s169, 128, %s3, [#allocation4], 128, 128, 8
    $region25: #{tpu_custom_call.1} parent=1 // pred_fallthru
      _
    // Predicated region
    $region26: #{tpu_custom_call.1} parent=1 // pred_check
      _
    $region27: #{tpu_custom_call.1} parent=1 // pred_check_branch
      %176 = sbr.rel (0) target = $region29
    $region28: #{tpu_custom_call.1} parent=1 // pred_region
      %177 = dma.done [#allocation4], 256
    $region29: #{tpu_custom_call.1} parent=1 // pred_fallthru
      _
    %178 = vsyncpa [#allocation3], 1
    %179 = vsyncpa [#allocation6], 1
    %180 = vsyncpa [#allocation4], 1

// kernel: tpu_custom_call.1
$region0: #{tpu_custom_call.1}
  #allocation0 [shape = 'u32[]', space=smem, size = 0x4, offset = 0x4, fixed_abs, tag = 'smem constant byte address 0x4 - core index']
  #allocation1 [shape = 'u32[144,128]{1,0:T(1,128)}', space=vmem, size = 0x12000, scoped, tag = 'internal scratch']
  %s0 = inlined_call_operand.hbm [shape: f32[8,256], index: 0, kind: input, shape index: {}]
  %s1 = inlined_call_operand.hbm [shape: f32[256,128], index: 1, kind: input, shape index: {}]
  %s2 = inlined_call_operand.vmem [shape: f32[1,128], index: 2, kind: input, shape index: {}]
  %s3 = inlined_call_operand.hbm [shape: f32[8,128], index: 3, kind: output, shape index: {}]
  %s4 = sld [smem:[#allocation0]]
  $region30: #{tpu_custom_call.1} parent=0
    _
  %s6 = ssub.s32 1, %s4
  %s7 = scalar_select 0, %s6, %s4
  $region1: #{tpu_custom_call.1} parent=0
    #allocation2 [shape = 'u8[16384]{0}', space=vmem, size = 0x4000, scoped, tag = 'input window, operand 0, single buffered']
    #allocation3 [shape = 's32[1]{0}', space=sflag, size = 0x4, scoped, tag = 'scoped memory for tpu_custom_call.1']
    #allocation4 [shape = 's32[1]{0}', space=sflag, size = 0x4, scoped, tag = 'scoped memory for tpu_custom_call.1']
    #allocation5 [shape = 'u8[131072]{0}', space=vmem, size = 0x20000, scoped, tag = 'input window, operand 1, single buffered']
    #allocation6 [shape = 's32[1]{0}', space=sflag, size = 0x4, scoped, tag = 'scoped memory for tpu_custom_call.1']
    #allocation7 [shape = 'u8[8192]{0}', space=vmem, size = 0x2000, scoped, tag = 'output window, operand 0, single buffered']
    %8 = vsyncpa [#allocation3], 0
    %9 = vsyncpa [#allocation6], 0
    %10 = vsyncpa [#allocation4], 0
    // Predicated region
    $region2: #{tpu_custom_call.1} parent=1 // pred_check
      _
    $region3: #{tpu_custom_call.1} parent=1 // pred_check_branch
      %12 = sbr.rel (0) target = $region5
    $region4: #{tpu_custom_call.1} parent=1 // pred_region
      %s14 = ssub.s32 512, 256
      %15 = vsyncadd [#allocation3], %s14
      %s16 = sshll.u32 [#allocation2], 4
      %s17 = int_to_ptr.vmem [resolvable:$true] %s16
      %22 = dma.hbm_to_vmem [thread:$0]  %s0, 256, %s17, [#allocation3], 256, 256, 16
    $region5: #{tpu_custom_call.1} parent=1 // pred_fallthru
      _
    // Predicated region
    $region6: #{tpu_custom_call.1} parent=1 // pred_check
      _
    $region7: #{tpu_custom_call.1} parent=1 // pred_check_branch
      %24 = sbr.rel (0) target = $region9
    $region8: #{tpu_custom_call.1} parent=1 // pred_region
      %s26 = ssub.s32 4096, 4096
      %27 = vsyncadd [#allocation6], %s26
      %s28 = sshll.u32 [#allocation5], 4
      %s29 = int_to_ptr.vmem [resolvable:$true] %s28
      %34 = dma.hbm_to_vmem [thread:$0]  %s1, 4096, %s29, [#allocation6], 128, 128, 8
    $region9: #{tpu_custom_call.1} parent=1 // pred_fallthru
      _
    // Predicated region
    $region10: #{tpu_custom_call.1} parent=1 // pred_check
      _
    $region11: #{tpu_custom_call.1} parent=1 // pred_check_branch
      %36 = sbr.rel (0) target = $region13
    $region12: #{tpu_custom_call.1} parent=1 // pred_region
      _
    $region13: #{tpu_custom_call.1} parent=1 // pred_fallthru
      _
    // Predicated region
    $region14: #{tpu_custom_call.1} parent=1 // pred_check
      _
    $region15: #{tpu_custom_call.1} parent=1 // pred_check_branch
      %38 = sbr.rel (0) target = $region17
    $region16: #{tpu_custom_call.1} parent=1 // pred_region
      %39 = dma.done [#allocation3], 512
    $region17: #{tpu_custom_call.1} parent=1 // pred_fallthru
      _
    // Predicated region
    $region18: #{tpu_custom_call.1} parent=1 // pred_check
      _
    $region19: #{tpu_custom_call.1} parent=1 // pred_check_branch
      %41 = sbr.rel (0) target = $region21
    $region20: #{tpu_custom_call.1} parent=1 // pred_region
      %42 = dma.done [#allocation6], 4096
    $region21: #{tpu_custom_call.1} parent=1 // pred_fallthru
      _
    %v43 = vld [vmem:[#allocation2] sm:$0xff]
    %v44 = vld [vmem:[#allocation2 + $0x8] sm:$0xff]
    %v45 = vld [vmem:[#allocation2 + $0x10] sm:$0xff]
    %v46 = vld [vmem:[#allocation2 + $0x18] sm:$0xff]
    %v47 = vld [vmem:[#allocation5] sm:$0xff]
    %v48 = vld [vmem:[#allocation5 + $0x8] sm:$0xff]
    %v49 = vld [vmem:[#allocation5 + $0x10] sm:$0xff]
    %v50 = vld [vmem:[#allocation5 + $0x18] sm:$0xff]
    %v51 = vld [vmem:[#allocation5 + $0x20] sm:$0xff]
    %v52 = vld [vmem:[#allocation5 + $0x28] sm:$0xff]
    %v53 = vld [vmem:[#allocation5 + $0x30] sm:$0xff]
    %v54 = vld [vmem:[#allocation5 + $0x38] sm:$0xff]
    %v55 = vld [vmem:[#allocation5 + $0x40] sm:$0xff]
    %v56 = vld [vmem:[#allocation5 + $0x48] sm:$0xff]
    %v57 = vld [vmem:[#allocation5 + $0x50] sm:$0xff]
    %v58 = vld [vmem:[#allocation5 + $0x58] sm:$0xff]
    %v59 = vld [vmem:[#allocation5 + $0x60] sm:$0xff]
    %v60 = vld [vmem:[#allocation5 + $0x68] sm:$0xff]
    %v61 = vld [vmem:[#allocation5 + $0x70] sm:$0xff]
    %v62 = vld [vmem:[#allocation5 + $0x78] sm:$0xff]
    %v63 = vld [vmem:[#allocation5 + $0x80] sm:$0xff]
    %v64 = vld [vmem:[#allocation5 + $0x88] sm:$0xff]
    %v65 = vld [vmem:[#allocation5 + $0x90] sm:$0xff]
    %v66 = vld [vmem:[#allocation5 + $0x98] sm:$0xff]
    %v67 = vld [vmem:[#allocation5 + $0xa0] sm:$0xff]
    %v68 = vld [vmem:[#allocation5 + $0xa8] sm:$0xff]
    %v69 = vld [vmem:[#allocation5 + $0xb0] sm:$0xff]
    %v70 = vld [vmem:[#allocation5 + $0xb8] sm:$0xff]
    %v71 = vld [vmem:[#allocation5 + $0xc0] sm:$0xff]
    %v72 = vld [vmem:[#allocation5 + $0xc8] sm:$0xff]
    %v73 = vld [vmem:[#allocation5 + $0xd0] sm:$0xff]
    %v74 = vld [vmem:[#allocation5 + $0xd8] sm:$0xff]
    %v75 = vld [vmem:[#allocation5 + $0xe0] sm:$0xff]
    %v76 = vld [vmem:[#allocation5 + $0xe8] sm:$0xff]
    %v77 = vld [vmem:[#allocation5 + $0xf0] sm:$0xff]
    %v78 = vld [vmem:[#allocation5 + $0xf8] sm:$0xff]
    %v79 = vld [vmem:[%s2] sm:$0x1]
    %v81 = vlaneseq
    %v82 = vshrl.u32 %v81, 7
    %v83 = vsub.s32 0, %v82
    %v84 = vrot.slane %v79, %v83
    %86 = vmatprep.subr.mxu0 0.0
    %87 = vmatpush1.msra.mxu0 %v62
    %88 = vmatprep.subr.mxu0 0.0
    %89 = vmatpush1.msra.mxu0 %v61
    %90 = vmatprep.subr.mxu0 0.0
    %91 = vmatpush1.msra.mxu0 %v60
    %92 = vmatprep.subr.mxu0 0.0
    %93 = vmatpush1.msra.mxu0 %v59
    %94 = vmatprep.subr.mxu0 0.0
    %95 = vmatpush1.msra.mxu0 %v58
    %96 = vmatprep.subr.mxu0 0.0
    %97 = vmatpush1.msra.mxu0 %v57
    %98 = vmatprep.subr.mxu0 0.0
    %99 = vmatpush1.msra.mxu0 %v56
    %100 = vmatprep.subr.mxu0 0.0
    %101 = vmatpush1.msra.mxu0 %v55
    %102 = vmatprep.subr.mxu0 0.0
    %103 = vmatpush1.msra.mxu0 %v54
    %104 = vmatprep.subr.mxu0 0.0
    %105 = vmatpush1.msra.mxu0 %v53
    %106 = vmatprep.subr.mxu0 0.0
    %107 = vmatpush1.msra.mxu0 %v52
    %108 = vmatprep.subr.mxu0 0.0
    %109 = vmatpush1.msra.mxu0 %v51
    %110 = vmatprep.subr.mxu0 0.0
    %111 = vmatpush1.msra.mxu0 %v50
    %112 = vmatprep.subr.mxu0 0.0
    %113 = vmatpush1.msra.mxu0 %v49
    %114 = vmatprep.subr.mxu0 0.0
    %115 = vmatpush1.msra.mxu0 %v48
    %116 = vmatprep.subr.mxu0 0.0
    %117 = vmatpush1.msra.mxu0 %v47
    %118 = vmatprep.subr.mxu0 0.0
    %119 = vmatpush2.msra.mxu0 %v78
    %120 = vmatprep.subr.mxu0 0.0
    %121 = vmatpush2.msra.mxu0 %v77
    %122 = vmatprep.subr.mxu0 0.0
    %123 = vmatpush2.msra.mxu0 %v76
    %124 = vmatprep.subr.mxu0 0.0
    %125 = vmatpush2.msra.mxu0 %v75
    %126 = vmatprep.subr.mxu0 0.0
    %127 = vmatpush2.msra.mxu0 %v74
    %128 = vmatprep.subr.mxu0 0.0
    %129 = vmatpush2.msra.mxu0 %v73
    %130 = vmatprep.subr.mxu0 0.0
    %131 = vmatpush2.msra.mxu0 %v72
    %132 = vmatprep.subr.mxu0 0.0
    %133 = vmatpush2.msra.mxu0 %v71
    %134 = vmatprep.subr.mxu0 0.0
    %135 = vmatpush2.msra.mxu0 %v70
    %136 = vmatprep.subr.mxu0 0.0
    %137 = vmatpush2.msra.mxu0 %v69
    %138 = vmatprep.subr.mxu0 0.0
    %139 = vmatpush2.msra.mxu0 %v68
    %140 = vmatprep.subr.mxu0 0.0
    %141 = vmatpush2.msra.mxu0 %v67
    %142 = vmatprep.subr.mxu0 0.0
    %143 = vmatpush2.msra.mxu0 %v66
    %144 = vmatprep.subr.mxu0 0.0
    %145 = vmatpush2.msra.mxu0 %v65
    %146 = vmatprep.subr.mxu0 0.0
    %147 = vmatpush2.msra.mxu0 %v64
    %148 = vmatprep.subr.mxu0 0.0
    %149 = vmatpush2.msra.mxu0 %v63
    %150 = vmatprep.mubr.f32.mxu0 %v44
    %151 = vmatmul.mubr.f32.gmra.mxu0 %v43
    %v152 = vpop.f32.mrf.mxu0
    %v153 = vadd.f32 %v84, %v152
    %v154 = vpop.f32.mrf.mxu0
    %155 = vmatprep.mubr.f32.mxu0 %v46
    %156 = vmatmul.mubr.f32.gmra.mxu0 %v45
    %v157 = vpop.f32.mrf.mxu0
    %v158 = vadd.f32 %v84, %v157
    %v159 = vpop.f32.mrf.mxu0
    %160 = vdwg.mxu0
    %161 = vst [vmem:[#allocation7] sm:$0xff] %v153
    %162 = vst [vmem:[#allocation7 + $0x8] sm:$0xff] %v158
    // Predicated region
    $region22: #{tpu_custom_call.1} parent=1 // pred_check
      _
    $region23: #{tpu_custom_call.1} parent=1 // pred_check_branch
      %164 = sbr.rel (0) target = $region25
    $region24: #{tpu_custom_call.1} parent=1 // pred_region
      %s166 = ssub.s32 256, 128
      %167 = vsyncadd [#allocation4], %s166
      %s168 = sshll.u32 [#allocation7], 4
      %s169 = int_to_ptr.vmem [resolvable:$true] %s168
      %174 = dma.vmem_to_hbm [thread:$0]  %s169, 128, %s3, [#allocation4], 128, 128, 8
    $region25: #{tpu_custom_call.1} parent=1 // pred_fallthru
      _
    // Predicated region
    $region26: #{tpu_custom_call.1} parent=1 // pred_check
      _
    $region27: #{tpu_custom_call.1} parent=1 // pred_check_branch
      %176 = sbr.rel (0) target = $region29
    $region28: #{tpu_custom_call.1} parent=1 // pred_region
      %177 = dma.done [#allocation4], 256
    $region29: #{tpu_custom_call.1} parent=1 // pred_fallthru
      _
    %178 = vsyncpa [#allocation3], 1
    %179 = vsyncpa [#allocation6], 1
    %180 = vsyncpa [#allocation4], 1

</llo_original>
